<compile_context>
chip_gen: v6e
topology: v6e:2x2x1
jax: 0.10.0
libtpu: 0.0.40
codegen_flags: <defaults>
</compile_context>

<pallas_src>
import functools

import jax
import jax.numpy as jnp
from jax import lax
from jax.experimental import pallas as pl
from jax.experimental.pallas import tpu as pltpu

_MIB = 1024 * 1024


def _round_up(a, b):
    return (a + b - 1) // b * b


def _sublane_packing(dtype):
    # 32-bit -> 8 sublanes, 16-bit -> 16, 8-bit -> 32 (packed sublane layout).
    itemsize = jnp.dtype(dtype).itemsize
    return 8 * max(1, 4 // max(itemsize, 1))


def _vmem_capacity_bytes():
    try:
        info = pltpu.get_tpu_info()
        cap = getattr(info, "vmem_capacity_bytes", None)
        if cap:
            return int(cap)
    except Exception:
        pass
    return 64 * _MIB  # conservative (v7x-sized) fallback


def _tile_footprint_bytes(tm, tn, d, x_bytes, w_bytes, out_bytes):
    # Double-buffered pipeline footprint for the chosen BlockSpecs + scratch.
    return (2 * tm * d * x_bytes        # x row tile (double buffered)
            + 2 * tn * d * w_bytes      # weight block (double buffered)
            + 2 * tm * tn * out_bytes   # output block (double buffered)
            + tm * d * w_bytes          # LN(x) scratch (single)
            + 2 * 2 * d * 4             # gamma, beta
            + 2 * tn * 4)               # bias block


def _pick_tiles(m, n_pad, d, x_dtype, w_dtype, out_dtype, packing, budget):
    x_b = jnp.dtype(x_dtype).itemsize
    w_b = jnp.dtype(w_dtype).itemsize
    o_b = jnp.dtype(out_dtype).itemsize

    tn_candidates = [t for t in (512, 256, 128) if n_pad % t == 0] or [128]
    tm_cap = max(packing, _round_up(m, packing))
    raw_tm = (1024, 768, 512, 384, 256, 128, 64, 32, 16, 8)
    tm_candidates = sorted(
        {min(max(packing, _round_up(t, packing)), tm_cap) for t in raw_tm},
        reverse=True)

    usable = int(budget * 0.85)  # leave headroom for Mosaic internal scratch
    for tm in tm_candidates:       # big tm first: weight re-streaming ~ 1/tm
        for tn in tn_candidates:   # then big tn: amortize per-step overhead
            if _tile_footprint_bytes(tm, tn, d, x_b, w_b, o_b) <= usable:
                return tm, tn
    return tm_candidates[-1], 128


def _ln_linear_kernel(x_ref, gamma_ref, beta_ref, w_ref, b_ref, o_ref,
                      normed_ref, *, eps):
    # x_ref:      (TM, D)   row tile of input (resident across the N loop)
    # gamma_ref:  (1, D)    LayerNorm scale (f32)
    # beta_ref:   (1, D)    LayerNorm shift (f32)
    # w_ref:      (TN, D)   linear weight block, native dtype, untransposed
    # b_ref:      (1, TN)   linear bias block (f32)
    # o_ref:      (TM, TN)
    # normed_ref: (TM, D)   VMEM scratch holding LN(x) in the matmul dtype

    # LayerNorm once per row tile; reuse for every output-column tile.
    # Valid because the N grid axis is "arbitrary" (sequential, innermost).
    @pl.when(pl.program_id(1) == 0)
    def _():
        xf = x_ref[...].astype(jnp.float32)
        mean = jnp.mean(xf, axis=-1, keepdims=True)
        xc = xf - mean
        var = jnp.mean(xc * xc, axis=-1, keepdims=True)  # biased, like torch
        inv = lax.rsqrt(var + eps)
        normed = xc * inv * gamma_ref[...] + beta_ref[...]
        normed_ref[...] = normed.astype(normed_ref.dtype)

    # Linear: contract the shared D axis (rhs-transposed form, consumed by the
    # MXU natively -- no wrapper-side W.T pass over HBM), f32 accumulation.
    acc = lax.dot_general(
        normed_ref[...], w_ref[...],
        dimension_numbers=(((1,), (1,)), ((), ())),
        preferred_element_type=jnp.float32)
    acc = acc + b_ref[...]
    o_ref[...] = acc.astype(o_ref.dtype)


def layernorm_linear(x, gamma, beta, weight, bias, *, eps=1e-5,
                     tile_m=None, tile_n=None):
    """x: (..., in_features). weight: (out_features, in_features). bias: (out_features,)."""
    orig_shape = x.shape
    D = orig_shape[-1]
    N = weight.shape[0]
    x2d = x.reshape(-1, D)
    M = x2d.shape[0]

    packing = _sublane_packing(x.dtype)
    vmem_cap = _vmem_capacity_bytes()
    # 128 MiB chips (v5e/v6e) -> ~96 MiB budget; 64 MiB (v7x) -> ~48 MiB.
    budget = vmem_cap - max(16 * _MIB, vmem_cap // 4)

    # Lane-dense output stores with minimal padding.
    N_pad = _round_up(N, 128)
    auto_tm, auto_tn = _pick_tiles(M, N_pad, D, x.dtype, weight.dtype, x.dtype,
                                   packing, budget)
    if tile_m is None:
        tile_m = auto_tm
    if tile_n is None:
        tile_n = auto_tn

    # Megacore (v7x) fix: only M is "parallel"; make sure there are at least
    # two row tiles when the batch allows it so both TensorCores get work.
    if _round_up(M, tile_m) // tile_m < 2 and M > packing:
        tile_m = max(packing, _round_up(-(-M // 2), packing))

    M_pad = _round_up(M, tile_m)
    N_pad = _round_up(N_pad, tile_n)

    if M_pad != M:
        x2d = jnp.pad(x2d, ((0, M_pad - M), (0, 0)))
    w = weight
    b = bias
    if N_pad != N:
        w = jnp.pad(w, ((0, N_pad - N), (0, 0)))
        b = jnp.pad(b, (0, N_pad - N))

    # Pre-cast the small grid-invariant operands once (no per-step astype).
    gamma2 = gamma.reshape(1, D).astype(jnp.float32)
    beta2 = beta.reshape(1, D).astype(jnp.float32)
    b2 = b.reshape(1, N_pad).astype(jnp.float32)

    # LN output is stored in the weight dtype so the MXU gets matched
    # (e.g. bf16 x bf16 -> f32) operands for real models.
    normed_dtype = w.dtype

    grid = (M_pad // tile_m, N_pad // tile_n)

    # Advisory cost: matmul FLOPs + LN elementwise, one rsqrt per row, HBM
    # bytes include the weight re-stream once per row tile.
    flops = 2 * M_pad * N_pad * D + 6 * M_pad * D
    bytes_accessed = (x2d.size * jnp.dtype(x2d.dtype).itemsize
                      + w.size * jnp.dtype(w.dtype).itemsize * grid[0]
                      + M_pad * N_pad * jnp.dtype(x.dtype).itemsize
                      + (2 * D + N_pad) * 4)
    cost = pl.CostEstimate(flops=int(flops), transcendentals=int(M_pad),
                           bytes_accessed=int(bytes_accessed))

    kernel = functools.partial(_ln_linear_kernel, eps=eps)

    out = pl.pallas_call(
        kernel,
        out_shape=jax.ShapeDtypeStruct((M_pad, N_pad), x.dtype),
        grid_spec=pltpu.PrefetchScalarGridSpec(
            num_scalar_prefetch=0,
            grid=grid,
            in_specs=[
                pl.BlockSpec((tile_m, D), lambda i, j: (i, 0)),   # x rows, resident over j
                pl.BlockSpec((1, D), lambda i, j: (0, 0)),        # gamma
                pl.BlockSpec((1, D), lambda i, j: (0, 0)),        # beta
                pl.BlockSpec((tile_n, D), lambda i, j: (j, 0)),   # weight block (untransposed)
                pl.BlockSpec((1, tile_n), lambda i, j: (0, j)),   # bias block
            ],
            out_specs=pl.BlockSpec((tile_m, tile_n), lambda i, j: (i, j)),
            scratch_shapes=[pltpu.VMEM((tile_m, D), normed_dtype)],
        ),
        compiler_params=pltpu.CompilerParams(
            dimension_semantics=("parallel", "arbitrary"),
            vmem_limit_bytes=int(budget)),
        cost_estimate=cost,
    )(x2d, gamma2, beta2, w, b2)

    out = out[:M, :N]
    return out.reshape(*orig_shape[:-1], N)


def _reference(x, gamma, beta, weight, bias, eps):
    xf = x.astype(jnp.float32)
    mean = jnp.mean(xf, axis=-1, keepdims=True)
    var = jnp.mean((xf - mean) ** 2, axis=-1, keepdims=True)
    normed = (xf - mean) * lax.rsqrt(var + eps) * gamma + beta
    return (normed @ weight.T + bias).astype(x.dtype)


if __name__ == "__main__":
    # Shapes consistent with the module: in_features=32, out_features=32,
    # input x of shape (batch=2, seq=8, in_features=32).
    batch, seq, in_features, out_features = 2, 8, 32, 32
    eps = 1e-5

    key = jax.random.PRNGKey(0)
    kx, kw, kb = jax.random.split(key, 3)

    x = jax.random.normal(kx, (batch, seq, in_features), dtype=jnp.float32)

    # Deterministic parameter init matching module __init__ conventions:
    # LayerNorm: weight=ones, bias=zeros. Linear: uniform(-1/sqrt(in), 1/sqrt(in)).
    gamma = jnp.ones((in_features,), jnp.float32)
    beta = jnp.zeros((in_features,), jnp.float32)
    bound = 1.0 / (in_features ** 0.5)
    weight = jax.random.uniform(kw, (out_features, in_features),
                                jnp.float32, -bound, bound)
    bias = jax.random.uniform(kb, (out_features,), jnp.float32, -bound, bound)

    out = layernorm_linear(x, gamma, beta, weight, bias, eps=eps)
    out = jax.block_until_ready(out)

    ref = _reference(x, gamma, beta, weight, bias, eps)
    assert out.shape == (batch, seq, out_features)
    assert jnp.allclose(out, ref, atol=1e-5, rtol=1e-5), "mismatch vs reference"

    print("KERNEL_OK")
</pallas_src>

<mosaic_0001>
module attributes {stable_mosaic.version = 11 : i64} {
  func.func @_ln_linear_kernel(%arg0: i32, %arg1: i32, %arg2: memref<8x32xf32, #tpu.memory_space<vmem>>, %arg3: memref<1x32xf32, #tpu.memory_space<vmem>>, %arg4: memref<1x32xf32, #tpu.memory_space<vmem>>, %arg5: memref<128x32xf32, #tpu.memory_space<vmem>>, %arg6: memref<1x128xf32, #tpu.memory_space<vmem>>, %arg7: memref<8x128xf32, #tpu.memory_space<vmem>>, %arg8: memref<8x32xf32, #tpu.memory_space<vmem>>) attributes {dimension_semantics = [#tpu.dimension_semantics<parallel>, #tpu.dimension_semantics<arbitrary>], iteration_bounds = array<i64: 2, 1>, scalar_prefetch = 0 : i64, scratch_operands = 1 : i64, tpu.core_type = #tpu.core_type<tc>, window_params = [{transform_indices = @transform_0, window_bounds = array<i64: 8, 32>}, {pipeline_mode = #tpu.pipeline_mode<synchronous>, transform_indices = @transform_1, window_bounds = array<i64: 1, 32>}, {pipeline_mode = #tpu.pipeline_mode<synchronous>, transform_indices = @transform_2, window_bounds = array<i64: 1, 32>}, {transform_indices = @transform_3, window_bounds = array<i64: 128, 32>}, {transform_indices = @transform_4, window_bounds = array<i64: 1, 128>}, {transform_indices = @transform_5, window_bounds = array<i64: 8, 128>}]} {
    %c0_i32 = arith.constant 0 : i32
    %0 = arith.cmpi eq, %arg1, %c0_i32 : i32
    %1 = arith.extui %0 : i1 to i32
    %c0_i32_0 = arith.constant 0 : i32
    %2 = arith.cmpi ne, %1, %c0_i32_0 : i32
    scf.if %2 {
      %c0_8 = arith.constant 0 : index
      %c0_9 = arith.constant 0 : index
      %10 = vector.load %arg2[%c0_8, %c0_9] : memref<8x32xf32, #tpu.memory_space<vmem>>, vector<8x32xf32>
      %cst_10 = arith.constant dense<0.000000e+00> : vector<8xf32>
      %11 = vector.multi_reduction <add>, %10, %cst_10 [1] : vector<8x32xf32> to vector<8xf32>
      %12 = vector.shape_cast %11 : vector<8xf32> to vector<8x1xf32>
      %cst_11 = arith.constant 3.200000e+01 : f32
      %13 = vector.broadcast %cst_11 : f32 to vector<8x1xf32>
      %14 = arith.divf %12, %13 : vector<8x1xf32>
      %15 = vector.broadcast %14 : vector<8x1xf32> to vector<8x32xf32>
      %16 = arith.subf %10, %15 : vector<8x32xf32>
      %17 = arith.mulf %16, %16 : vector<8x32xf32>
      %cst_12 = arith.constant dense<0.000000e+00> : vector<8xf32>
      %18 = vector.multi_reduction <add>, %17, %cst_12 [1] : vector<8x32xf32> to vector<8xf32>
      %19 = vector.shape_cast %18 : vector<8xf32> to vector<8x1xf32>
      %cst_13 = arith.constant 3.200000e+01 : f32
      %20 = vector.broadcast %cst_13 : f32 to vector<8x1xf32>
      %21 = arith.divf %19, %20 : vector<8x1xf32>
      %cst_14 = arith.constant 9.99999974E-6 : f32
      %22 = vector.broadcast %cst_14 : f32 to vector<8x1xf32>
      %23 = arith.addf %21, %22 : vector<8x1xf32>
      %24 = math.rsqrt %23 : vector<8x1xf32>
      %25 = vector.broadcast %24 : vector<8x1xf32> to vector<8x32xf32>
      %26 = arith.mulf %16, %25 : vector<8x32xf32>
      %c0_15 = arith.constant 0 : index
      %c0_16 = arith.constant 0 : index
      %27 = vector.load %arg3[%c0_15, %c0_16] : memref<1x32xf32, #tpu.memory_space<vmem>>, vector<1x32xf32>
      %28 = vector.broadcast %27 : vector<1x32xf32> to vector<8x32xf32>
      %29 = arith.mulf %26, %28 : vector<8x32xf32>
      %c0_17 = arith.constant 0 : index
      %c0_18 = arith.constant 0 : index
      %30 = vector.load %arg4[%c0_17, %c0_18] : memref<1x32xf32, #tpu.memory_space<vmem>>, vector<1x32xf32>
      %31 = vector.broadcast %30 : vector<1x32xf32> to vector<8x32xf32>
      %32 = arith.addf %29, %31 : vector<8x32xf32>
      %c0_19 = arith.constant 0 : index
      %c0_20 = arith.constant 0 : index
      %33 = vector.load %arg8[%c0_19, %c0_20] : memref<8x32xf32, #tpu.memory_space<vmem>>, vector<8x32xf32>
      tpu.vector_store %arg8[%c0_19, %c0_20], %32 {strides = array<i32>} : memref<8x32xf32, #tpu.memory_space<vmem>>, vector<8x32xf32>,
    } else {
    }
    %c0 = arith.constant 0 : index
    %c0_1 = arith.constant 0 : index
    %3 = vector.load %arg8[%c0, %c0_1] : memref<8x32xf32, #tpu.memory_space<vmem>>, vector<8x32xf32>
    %c0_2 = arith.constant 0 : index
    %c0_3 = arith.constant 0 : index
    %4 = vector.load %arg5[%c0_2, %c0_3] : memref<128x32xf32, #tpu.memory_space<vmem>>, vector<128x32xf32>
    %cst = arith.constant dense<0.000000e+00> : vector<8x128xf32>
    %5 = tpu.matmul %3, %4, %cst {dimension_numbers = #tpu.dot_dimension_numbers<[1], [1], [0], [0], [0, 0, 1, 0], [], []>} : vector<8x32xf32>, vector<128x32xf32>, vector<8x128xf32> -> vector<8x128xf32>
    %c0_4 = arith.constant 0 : index
    %c0_5 = arith.constant 0 : index
    %6 = vector.load %arg6[%c0_4, %c0_5] : memref<1x128xf32, #tpu.memory_space<vmem>>, vector<1x128xf32>
    %7 = vector.broadcast %6 : vector<1x128xf32> to vector<8x128xf32>
    %8 = arith.addf %5, %7 : vector<8x128xf32>
    %c0_6 = arith.constant 0 : index
    %c0_7 = arith.constant 0 : index
    %9 = vector.load %arg7[%c0_6, %c0_7] : memref<8x128xf32, #tpu.memory_space<vmem>>, vector<8x128xf32>
    tpu.vector_store %arg7[%c0_6, %c0_7], %8 {strides = array<i32>} : memref<8x128xf32, #tpu.memory_space<vmem>>, vector<8x128xf32>,
    return
  }
  func.func @transform_0(%arg0: i32, %arg1: i32) -> (i32, i32) {
    %c0_i32 = arith.constant 0 : i32
    %c0_i32_0 = arith.constant 0 : i32
    return %arg0, %c0_i32 : i32, i32
  }
  func.func @transform_1(%arg0: i32, %arg1: i32) -> (i32, i32) {
    %c0_i32 = arith.constant 0 : i32
    %c0_i32_0 = arith.constant 0 : i32
    %c0_i32_1 = arith.constant 0 : i32
    return %c0_i32, %c0_i32_0 : i32, i32
  }
  func.func @transform_2(%arg0: i32, %arg1: i32) -> (i32, i32) {
    %c0_i32 = arith.constant 0 : i32
    %c0_i32_0 = arith.constant 0 : i32
    %c0_i32_1 = arith.constant 0 : i32
    return %c0_i32, %c0_i32_0 : i32, i32
  }
  func.func @transform_3(%arg0: i32, %arg1: i32) -> (i32, i32) {
    %c0_i32 = arith.constant 0 : i32
    %c0_i32_0 = arith.constant 0 : i32
    return %arg1, %c0_i32 : i32, i32
  }
  func.func @transform_4(%arg0: i32, %arg1: i32) -> (i32, i32) {
    %c0_i32 = arith.constant 0 : i32
    %c0_i32_0 = arith.constant 0 : i32
    return %c0_i32, %arg1 : i32, i32
  }
  func.func @transform_5(%arg0: i32, %arg1: i32) -> (i32, i32) {
    %c0_i32 = arith.constant 0 : i32
    return %arg0, %arg1 : i32, i32
  }
}

</mosaic_0001>

<llo_original>
// kernel: tpu_custom_call.1
$region0: #{tpu_custom_call.1}
  #allocation0 [shape = 'u32[]', space=smem, size = 0x4, offset = 0x4, fixed_abs, tag = 'smem constant byte address 0x4 - core index']
  #allocation1 [shape = 'u32[144,128]{1,0:T(1,128)}', space=vmem, size = 0x12000, scoped, tag = 'internal scratch']
  #allocation2 [shape = 'f32[8,32]{1,0:T(8,128)}', space=vmem, size = 0x1000, scoped, tag = 'scratch operand']
  %s0 = inlined_call_operand.vmem [shape: f32[16,32], index: 0, kind: input, shape index: {}]
  %s1 = inlined_call_operand.vmem [shape: f32[1,32], index: 1, kind: input, shape index: {}]
  %s2 = inlined_call_operand.vmem [shape: f32[1,32], index: 2, kind: input, shape index: {}]
  %s3 = inlined_call_operand.vmem [shape: f32[128,32], index: 3, kind: input, shape index: {}]
  %s4 = inlined_call_operand.vmem [shape: f32[1,128], index: 4, kind: input, shape index: {}]
  %s5 = inlined_call_operand.hbm [shape: f32[16,128], index: 5, kind: output, shape index: {}]
  %s6 = sld [smem:[#allocation0]]
  $region57: #{tpu_custom_call.1} parent=0
    _
  %s8 = ssub.s32 1, %s6
  %s9 = scalar_select 0, %s8, %s6
  $region1: #{tpu_custom_call.1} parent=0
    #allocation3 [shape = 'u8[8192]{0}', space=vmem, size = 0x2000, scoped, tag = 'output window, operand 0']
    #allocation4 [shape = 's32[2]{0}', space=sflag, size = 0x8, scoped, tag = 'scoped memory for tpu_custom_call.1']
    %10 = vsyncpa [#allocation4], 0
    %s11 = scalar_lea.sflag [#allocation4], 1
    %12 = vsyncpa %s11, 0
    loop: start=0, step=1, limit=4
    $region2: #{tpu_custom_call.1} parent=1 // loop_pre_header
      _
    $region3: #{tpu_custom_call.1} parent=1 // loop_header
      %s14 = sphi 0, %s18
      %p15 = scmp.ge.s32.totalorder %s14, 4
      %s21 = sphi 0, %s33
      %s22 = sphi 0, %s29
      %s23 = sphi 0, %s21
      %s24 = sphi 0, %s22
      %s25 = sphi 0, %s23
      %s26 = sphi 0, %s24
      %s36 = sphi 0, %s38
      %s39 = sphi 0, %s36
      %s40 = sphi 0, %s39
      %s56 = sphi 0, %s40
      %s60 = sphi 0, %s60
      %s62 = sphi 0, %s60
      %s63 = sphi 0, %s62
      %s77 = sphi 0, %s63
      %s81 = sphi 0, %s81
      %s83 = sphi 0, %s81
      %s84 = sphi 0, %s83
      %s98 = sphi 0, %s84
      %s104 = sphi 0, %s106
      %s107 = sphi 0, %s104
      %s108 = sphi 0, %s107
      %s124 = sphi 0, %s108
      %s130 = sphi 0, %s132
      %s133 = sphi 0, %s130
      %s134 = sphi 0, %s133
      %s150 = sphi 0, %s134
      %s158 = sphi 0, %s160
      %s161 = sphi 0, %s158
      %s162 = sphi 0, %s161
      %s178 = sphi 0, %s162
    $region4: #{tpu_custom_call.1} parent=1 // loop_header_branch
      %17 = sbr.rel (%p15) target = $region8
    $region5: #{tpu_custom_call.1} parent=1 // loop_body
      %s19 = ssub.s32 %s14, 1
      %s20 = ssub.s32 %s14, 2
      %s27 = sadd.s32 1, %s22
      %p28 = scmp.ge.s32.totalorder %s27, 1
      %s29 = scalar_select %p28, 0, %s27
      %s30 = sadd.s32 1, %s21
      %s31 = scalar_select %p28, %s30, %s21
      %p32 = scmp.ge.s32.totalorder %s31, 2
      %s33 = scalar_select %p32, 0, %s31
      %s34 = ssub.s32 %s21, %s33
      %p35 = scmp.eq.s32.totalorder %s34, 0
      %s37 = sadd.s32 %s36, 1
      %s38 = scalar_select %p35, %s36, %s37
      %p41 = pneg %p35
      %p42 = scmp.eq.s32.totalorder %s14, 1
      %p43 = por %p41, %p42
      %p44 = scmp.ne.s32.totalorder %s36, %s39
      %p45 = scmp.eq.s32.totalorder %s14, 0
      %p46 = por %p44, %p45
      %p47 = scmp.ne.s32.totalorder %s36, %s39
      %p48 = scmp.eq.s32.totalorder %s19, 1
      %p49 = por %p47, %p48
      %p50 = scmp.ne.s32.totalorder %s39, %s40
      %p51 = scmp.eq.s32.totalorder %s19, 0
      %p52 = por %p50, %p51
      %p53 = scmp.ne.s32.totalorder %s39, %s40
      %p54 = scmp.eq.s32.totalorder %s20, 1
      %p55 = por %p53, %p54
      %p57 = scmp.ne.s32.totalorder %s40, %s56
      %p58 = scmp.eq.s32.totalorder %s20, 0
      %p59 = por %p57, %p58
      %s61 = sadd.s32 %s60, 1
      %p64 = scmp.eq.s32.totalorder %s14, 1
      %p65 = scmp.ne.s32.totalorder %s60, %s62
      %p66 = scmp.eq.s32.totalorder %s14, 0
      %p67 = por %p65, %p66
      %p68 = scmp.ne.s32.totalorder %s60, %s62
      %p69 = scmp.eq.s32.totalorder %s19, 1
      %p70 = por %p68, %p69
      %p71 = scmp.ne.s32.totalorder %s62, %s63
      %p72 = scmp.eq.s32.totalorder %s19, 0
      %p73 = por %p71, %p72
      %p74 = scmp.ne.s32.totalorder %s62, %s63
      %p75 = scmp.eq.s32.totalorder %s20, 1
      %p76 = por %p74, %p75
      %p78 = scmp.ne.s32.totalorder %s63, %s77
      %p79 = scmp.eq.s32.totalorder %s20, 0
      %p80 = por %p78, %p79
      %s82 = sadd.s32 %s81, 1
      %p85 = scmp.eq.s32.totalorder %s14, 1
      %p86 = scmp.ne.s32.totalorder %s81, %s83
      %p87 = scmp.eq.s32.totalorder %s14, 0
      %p88 = por %p86, %p87
      %p89 = scmp.ne.s32.totalorder %s81, %s83
      %p90 = scmp.eq.s32.totalorder %s19, 1
      %p91 = por %p89, %p90
      %p92 = scmp.ne.s32.totalorder %s83, %s84
      %p93 = scmp.eq.s32.totalorder %s19, 0
      %p94 = por %p92, %p93
      %p95 = scmp.ne.s32.totalorder %s83, %s84
      %p96 = scmp.eq.s32.totalorder %s20, 1
      %p97 = por %p95, %p96
      %p99 = scmp.ne.s32.totalorder %s84, %s98
      %p100 = scmp.eq.s32.totalorder %s20, 0
      %p101 = por %p99, %p100
      %s102 = ssub.s32 %s22, %s29
      %p103 = scmp.eq.s32.totalorder %s102, 0
      %s105 = sadd.s32 %s104, 1
      %s106 = scalar_select %p103, %s104, %s105
      %p109 = pneg %p103
      %p110 = scmp.eq.s32.totalorder %s14, 1
      %p111 = por %p109, %p110
      %p112 = scmp.ne.s32.totalorder %s104, %s107
      %p113 = scmp.eq.s32.totalorder %s14, 0
      %p114 = por %p112, %p113
      %p115 = scmp.ne.s32.totalorder %s104, %s107
      %p116 = scmp.eq.s32.totalorder %s19, 1
      %p117 = por %p115, %p116
      %p118 = scmp.ne.s32.totalorder %s107, %s108
      %p119 = scmp.eq.s32.totalorder %s19, 0
      %p120 = por %p118, %p119
      %p121 = scmp.ne.s32.totalorder %s107, %s108
      %p122 = scmp.eq.s32.totalorder %s20, 1
      %p123 = por %p121, %p122
      %p125 = scmp.ne.s32.totalorder %s108, %s124
      %p126 = scmp.eq.s32.totalorder %s20, 0
      %p127 = por %p125, %p126
      %s128 = ssub.s32 %s22, %s29
      %p129 = scmp.eq.s32.totalorder %s128, 0
      %s131 = sadd.s32 %s130, 1
      %s132 = scalar_select %p129, %s130, %s131
      %p135 = pneg %p129
      %p136 = scmp.eq.s32.totalorder %s14, 1
      %p137 = por %p135, %p136
      %p138 = scmp.ne.s32.totalorder %s130, %s133
      %p139 = scmp.eq.s32.totalorder %s14, 0
      %p140 = por %p138, %p139
      %p141 = scmp.ne.s32.totalorder %s130, %s133
      %p142 = scmp.eq.s32.totalorder %s19, 1
      %p143 = por %p141, %p142
      %p144 = scmp.ne.s32.totalorder %s133, %s134
      %p145 = scmp.eq.s32.totalorder %s19, 0
      %p146 = por %p144, %p145
      %p147 = scmp.ne.s32.totalorder %s133, %s134
      %p148 = scmp.eq.s32.totalorder %s20, 1
      %p149 = por %p147, %p148
      %p151 = scmp.ne.s32.totalorder %s134, %s150
      %p152 = scmp.eq.s32.totalorder %s20, 0
      %p153 = por %p151, %p152
      %s154 = ssub.s32 %s21, %s33
      %s155 = ssub.s32 %s22, %s29
      %s156 = sor.u32 %s154, %s155
      %p157 = scmp.eq.s32.totalorder %s156, 0
      %s159 = sadd.s32 %s158, 1
      %s160 = scalar_select %p157, %s158, %s159
      %p163 = pneg %p157
      %p164 = scmp.eq.s32.totalorder %s14, 1
      %p165 = por %p163, %p164
      %p166 = scmp.ne.s32.totalorder %s158, %s161
      %p167 = scmp.eq.s32.totalorder %s14, 0
      %p168 = por %p166, %p167
      %p169 = scmp.ne.s32.totalorder %s158, %s161
      %p170 = scmp.eq.s32.totalorder %s19, 1
      %p171 = por %p169, %p170
      %p172 = scmp.ne.s32.totalorder %s161, %s162
      %p173 = scmp.eq.s32.totalorder %s19, 0
      %p174 = por %p172, %p173
      %p175 = scmp.ne.s32.totalorder %s161, %s162
      %p176 = scmp.eq.s32.totalorder %s20, 1
      %p177 = por %p175, %p176
      %p179 = scmp.ne.s32.totalorder %s162, %s178
      %p180 = scmp.eq.s32.totalorder %s20, 0
      %p181 = por %p179, %p180
      %p182 = scmp.le.s32.totalorder 1, %s14
      %p183 = scmp.lt.s32.totalorder %s14, 3
      %p184 = pnand %p182, %p183
      %p185 = pneg %p184
      // Predicated region
      $region9: #{tpu_custom_call.1} parent=5 // pred_check
        _
      $region10: #{tpu_custom_call.1} parent=5 // pred_check_branch
        %187 = sbr.rel (%p184) target = $region12
      $region11: #{tpu_custom_call.1} parent=5 // pred_region
        %s188 = ssub.s32 %s14, 1
        // Predicated region
        $region13: #{tpu_custom_call.1} parent=11 // pred_check
          %p189 = pneg %p73
        $region14: #{tpu_custom_call.1} parent=11 // pred_check_branch
          %191 = sbr.rel (%p189) target = $region16
        $region15: #{tpu_custom_call.1} parent=11 // pred_region
          _
        $region16: #{tpu_custom_call.1} parent=11 // pred_fallthru
          _
        // Predicated region
        $region17: #{tpu_custom_call.1} parent=11 // pred_check
          %p192 = pneg %p94
        $region18: #{tpu_custom_call.1} parent=11 // pred_check_branch
          %194 = sbr.rel (%p192) target = $region20
        $region19: #{tpu_custom_call.1} parent=11 // pred_region
          _
        $region20: #{tpu_custom_call.1} parent=11 // pred_fallthru
          _
        // Predicated region
        $region21: #{tpu_custom_call.1} parent=11 // pred_check
          %p195 = pneg %p120
        $region22: #{tpu_custom_call.1} parent=11 // pred_check_branch
          %197 = sbr.rel (%p195) target = $region24
        $region23: #{tpu_custom_call.1} parent=11 // pred_region
          %s198 = smul.u32 16, %s24
          %p199 = scmp.lt.s32.totalorder %s198, 15
          %s200 = scalar_select %p199, %s198, 15
          %s201 = smul.addr %s200, 8
          %s202 = scalar_lea.vmem %s3, %s201
          %s203 = smul.u32 16, %s24
        $region24: #{tpu_custom_call.1} parent=11 // pred_fallthru
          _
        // Predicated region
        $region25: #{tpu_custom_call.1} parent=11 // pred_check
          %p204 = pneg %p146
        $region26: #{tpu_custom_call.1} parent=11 // pred_check_branch
          %206 = sbr.rel (%p204) target = $region28
        $region27: #{tpu_custom_call.1} parent=11 // pred_region
          %p207 = scmp.lt.s32.totalorder %s24, 0
          %s208 = scalar_select %p207, %s24, 0
          %s209 = scalar_lea.vmem %s4, %s208
        $region28: #{tpu_custom_call.1} parent=11 // pred_fallthru
          _
      $region12: #{tpu_custom_call.1} parent=5 // pred_fallthru
        _
      %p210 = scmp.lt.s32.totalorder %s14, 2
      // Predicated region
      $region29: #{tpu_custom_call.1} parent=5 // pred_check
        %p211 = pneg %p210
      $region30: #{tpu_custom_call.1} parent=5 // pred_check_branch
        %213 = sbr.rel (%p211) target = $region32
      $region31: #{tpu_custom_call.1} parent=5 // pred_region
        // Predicated region
        $region33: #{tpu_custom_call.1} parent=31 // pred_check
          %p214 = pneg %p46
        $region34: #{tpu_custom_call.1} parent=31 // pred_check_branch
          %216 = sbr.rel (%p214) target = $region36
        $region35: #{tpu_custom_call.1} parent=31 // pred_region
          %p217 = scmp.lt.s32.totalorder %s21, 1
          %s218 = scalar_select %p217, %s21, 1
          %s219 = smul.addr %s218, 8
          %s220 = scalar_lea.vmem %s0, %s219
        $region36: #{tpu_custom_call.1} parent=31 // pred_fallthru
          _
      $region32: #{tpu_custom_call.1} parent=5 // pred_fallthru
        _
      %p221 = scmp.le.s32.totalorder 1, %s14
      %p222 = scmp.lt.s32.totalorder %s14, 3
      %p223 = pnand %p221, %p222
      %p224 = pneg %p223
      // Predicated region
      $region37: #{tpu_custom_call.1} parent=5 // pred_check
        _
      $region38: #{tpu_custom_call.1} parent=5 // pred_check_branch
        %226 = sbr.rel (%p223) target = $region40
      $region39: #{tpu_custom_call.1} parent=5 // pred_region
        %s227 = ssub.s32 %s14, 1
        %p228 = scmp.lt.s32.totalorder %s23, 1
        %s229 = scalar_select %p228, %s23, 1
        %s230 = smul.addr %s229, 8
        %s231 = scalar_lea.vmem %s0, %s230
        %p232 = pneg %p52
        %p233 = pneg %p49
        %p234 = pneg %p73
        %p235 = pneg %p70
        %p236 = pneg %p94
        %p237 = pneg %p91
        %s238 = smul.u32 16, %s24
        %p239 = scmp.lt.s32.totalorder %s238, 15
        %s240 = scalar_select %p239, %s238, 15
        %s241 = smul.addr %s240, 8
        %s242 = scalar_lea.vmem %s3, %s241
        %p243 = pneg %p120
        %p244 = pneg %p117
        %p245 = scmp.lt.s32.totalorder %s24, 0
        %s246 = scalar_select %p245, %s24, 0
        %s247 = scalar_lea.vmem %s4, %s246
        %p248 = pneg %p146
        %p249 = pneg %p143
        %p250 = pneg %p174
        %p251 = pneg %p171
        %s252 = sand.u32 %s161, 1
        %s253 = scalar_lea.sflag [#allocation4], %s252
        %s254 = sand.u32 %s161, 1
        %s255 = smul.addr %s254, 8
        %s256 = scalar_lea.vmem [#allocation3], %s255
        %p257 = scmp.lt.s32.totalorder %s23, 1
        %s258 = scalar_select %p257, %s23, 1
        %s259 = smul.addr %s258, 8
        %s260 = scalar_lea.vmem %s0, %s259
        %s261 = smul.u32 16, %s24
        %p262 = scmp.lt.s32.totalorder %s261, 15
        %s263 = scalar_select %p262, %s261, 15
        %s264 = smul.addr %s263, 8
        %s265 = scalar_lea.vmem %s3, %s264
        %s266 = smul.u32 16, %s24
        %p267 = scmp.lt.s32.totalorder %s24, 0
        %s268 = scalar_select %p267, %s24, 0
        %s269 = scalar_lea.vmem %s4, %s268
        %p270 = scmp.eq.s32.totalorder %s24, 0
        // Predicated region
        $region41: #{tpu_custom_call.1} parent=39 // pred_check
          %p271 = pneg %p270
        $region42: #{tpu_custom_call.1} parent=39 // pred_check_branch
          %273 = sbr.rel (%p271) target = $region44
        $region43: #{tpu_custom_call.1} parent=39 // pred_region
          %v274 = vld [vmem:[%s260] sm:$0xff]
          %vm275 = vcmask 261120
          %v276 = vsel %vm275, %v274, 0.0
          %277 = vadd.xlane.f32.xlu0 %v276
          %v278 = vpop.xlane.xlu0 %277
          %v279 = vrcp.pop 32.0
          %v280 = vmul.f32 %v278, %v279
          %v281 = vsub.f32 %v274, %v280
          %v282 = vmul.f32 %v281, %v281
          %v283 = vsel %vm275, %v282, 0.0
          %284 = vadd.xlane.f32.xlu0 %v283
          %v285 = vpop.xlane.xlu0 %284
          %v286 = vmul.f32 %v285, %v279
          %v287 = vadd.f32 %v286, 1e-05
          %v288 = vrsqrt.pop %v287
          %v289 = vmul.f32 %v281, %v288
          %v290 = vld [vmem:[%s1] sm:$0x1]
          %v292 = vlaneseq
          %v293 = vshrl.u32 %v292, 7
          %v294 = vsub.s32 0, %v293
          %v295 = vrot.slane %v290, %v294
          %v297 = vmul.f32 %v289, %v295
          %v298 = vld [vmem:[%s2] sm:$0x1]
          %v300 = vlaneseq
          %v301 = vshrl.u32 %v300, 7
          %v302 = vsub.s32 0, %v301
          %v303 = vrot.slane %v298, %v302
          %v305 = vadd.f32 %v297, %v303
          %306 = vst.msk [vmem:[#allocation2] sm:$0xff] %vm275, %v305
        $region44: #{tpu_custom_call.1} parent=39 // pred_fallthru
          _
        %v307 = vld [vmem:[#allocation2] sm:$0xff]
        %v308 = vld [vmem:[%s265] sm:$0xff]
        %v309 = vld [vmem:[%s265 + $0x8] sm:$0xff]
        %v310 = vld [vmem:[%s265 + $0x10] sm:$0xff]
        %v311 = vld [vmem:[%s265 + $0x18] sm:$0xff]
        %v312 = vld [vmem:[%s265 + $0x20] sm:$0xff]
        %v313 = vld [vmem:[%s265 + $0x28] sm:$0xff]
        %v314 = vld [vmem:[%s265 + $0x30] sm:$0xff]
        %v315 = vld [vmem:[%s265 + $0x38] sm:$0xff]
        %v316 = vld [vmem:[%s265 + $0x40] sm:$0xff]
        %v317 = vld [vmem:[%s265 + $0x48] sm:$0xff]
        %v318 = vld [vmem:[%s265 + $0x50] sm:$0xff]
        %v319 = vld [vmem:[%s265 + $0x58] sm:$0xff]
        %v320 = vld [vmem:[%s265 + $0x60] sm:$0xff]
        %v321 = vld [vmem:[%s265 + $0x68] sm:$0xff]
        %v322 = vld [vmem:[%s265 + $0x70] sm:$0xff]
        %v323 = vld [vmem:[%s265 + $0x78] sm:$0xff]
        %v324 = vld [vmem:[%s269] sm:$0x1]
        %v326 = vlaneseq
        %v327 = vshrl.u32 %v326, 7
        %v328 = vsub.s32 0, %v327
        %v329 = vrot.slane %v324, %v328
        %vm331 = vcmask 261120
        %v333 = vsel %vm331, %v307, 0
        %v336 = vsel %vm331, %v308, 0
        %v339 = vsel %vm331, %v309, 0
        %v342 = vsel %vm331, %v310, 0
        %v345 = vsel %vm331, %v311, 0
        %v348 = vsel %vm331, %v312, 0
        %v351 = vsel %vm331, %v313, 0
        %v354 = vsel %vm331, %v314, 0
        %v357 = vsel %vm331, %v315, 0
        %v360 = vsel %vm331, %v316, 0
        %v363 = vsel %vm331, %v317, 0
        %v366 = vsel %vm331, %v318, 0
        %v369 = vsel %vm331, %v319, 0
        %v372 = vsel %vm331, %v320, 0
        %v375 = vsel %vm331, %v321, 0
        %v378 = vsel %vm331, %v322, 0
        %v381 = vsel %vm331, %v323, 0
        %383 = vmatprep.subr.mxu0 0.0
        %384 = vmatpush1.xpose.msra.mxu0 %v381
        %385 = vmatprep.subr.mxu0 0.0
        %386 = vmatpush1.xpose.msra.mxu0 %v378
        %387 = vmatprep.subr.mxu0 0.0
        %388 = vmatpush1.xpose.msra.mxu0 %v375
        %389 = vmatprep.subr.mxu0 0.0
        %390 = vmatpush1.xpose.msra.mxu0 %v372
        %391 = vmatprep.subr.mxu0 0.0
        %392 = vmatpush1.xpose.msra.mxu0 %v369
        %393 = vmatprep.subr.mxu0 0.0
        %394 = vmatpush1.xpose.msra.mxu0 %v366
        %395 = vmatprep.subr.mxu0 0.0
        %396 = vmatpush1.xpose.msra.mxu0 %v363
        %397 = vmatprep.subr.mxu0 0.0
        %398 = vmatpush1.xpose.msra.mxu0 %v360
        %399 = vmatprep.subr.mxu0 0.0
        %400 = vmatpush1.xpose.msra.mxu0 %v357
        %401 = vmatprep.subr.mxu0 0.0
        %402 = vmatpush1.xpose.msra.mxu0 %v354
        %403 = vmatprep.subr.mxu0 0.0
        %404 = vmatpush1.xpose.msra.mxu0 %v351
        %405 = vmatprep.subr.mxu0 0.0
        %406 = vmatpush1.xpose.msra.mxu0 %v348
        %407 = vmatprep.subr.mxu0 0.0
        %408 = vmatpush1.xpose.msra.mxu0 %v345
        %409 = vmatprep.subr.mxu0 0.0
        %410 = vmatpush1.xpose.msra.mxu0 %v342
        %411 = vmatprep.subr.mxu0 0.0
        %412 = vmatpush1.xpose.msra.mxu0 %v339
        %413 = vmatprep.subr.mxu0 0.0
        %414 = vmatpush1.xpose.msra.mxu0 %v336
        %415 = vmatprep.subr.mxu0 0.0
        %416 = vmatpush2.xpose.msra.mxu0 0.0
        %417 = vmatprep.subr.mxu0 0.0
        %418 = vmatpush2.xpose.msra.mxu0 0.0
        %419 = vmatprep.subr.mxu0 0.0
        %420 = vmatpush2.xpose.msra.mxu0 0.0
        %421 = vmatprep.subr.mxu0 0.0
        %422 = vmatpush2.xpose.msra.mxu0 0.0
        %423 = vmatprep.subr.mxu0 0.0
        %424 = vmatpush2.xpose.msra.mxu0 0.0
        %425 = vmatprep.subr.mxu0 0.0
        %426 = vmatpush2.xpose.msra.mxu0 0.0
        %427 = vmatprep.subr.mxu0 0.0
        %428 = vmatpush2.xpose.msra.mxu0 0.0
        %429 = vmatprep.subr.mxu0 0.0
        %430 = vmatpush2.xpose.msra.mxu0 0.0
        %431 = vmatprep.subr.mxu0 0.0
        %432 = vmatpush2.xpose.msra.mxu0 0.0
        %433 = vmatprep.subr.mxu0 0.0
        %434 = vmatpush2.xpose.msra.mxu0 0.0
        %435 = vmatprep.subr.mxu0 0.0
        %436 = vmatpush2.xpose.msra.mxu0 0.0
        %437 = vmatprep.subr.mxu0 0.0
        %438 = vmatpush2.xpose.msra.mxu0 0.0
        %439 = vmatprep.subr.mxu0 0.0
        %440 = vmatpush2.xpose.msra.mxu0 0.0
        %441 = vmatprep.subr.mxu0 0.0
        %442 = vmatpush2.xpose.msra.mxu0 0.0
        %443 = vmatprep.subr.mxu0 0.0
        %444 = vmatpush2.xpose.msra.mxu0 0.0
        %445 = vmatprep.subr.mxu0 0.0
        %446 = vmatpush2.xpose.msra.mxu0 0.0
        %447 = vmatprep.mubr.f32.mxu0 0.0
        %448 = vmatmul.mubr.f32.gmra.mxu0 %v333
        %v449 = vpop.f32.mrf.mxu0
        %v450 = vadd.f32 %v329, %v449
        %v451 = vpop.f32.mrf.mxu0
        %452 = vdwg.mxu0
        %453 = vst [vmem:[%s256] sm:$0xff] %v450
        %s454 = sand.u32 %s161, 1
        %s455 = scalar_lea.sflag [#allocation4], %s454
        %s456 = sand.u32 %s161, 1
        %s457 = smul.addr %s456, 8
        %s458 = scalar_lea.vmem [#allocation3], %s457
        // Predicated region
        $region45: #{tpu_custom_call.1} parent=39 // pred_check
          %p459 = pneg %p171
        $region46: #{tpu_custom_call.1} parent=39 // pred_check_branch
          %461 = sbr.rel (%p459) target = $region48
        $region47: #{tpu_custom_call.1} parent=39 // pred_region
          %s463 = ssub.s32 128, 128
          %464 = vsyncadd %s455, %s463
          %s465 = sadd.s32 %s24, %s23
          %s466 = smul.addr %s465, 128
          %s467 = scalar_lea.hbm %s5, %s466
          %s469 = sshll.u32 %s458, 4
          %s470 = int_to_ptr.vmem [resolvable:$true] %s469
          %472 = dma.vmem_to_hbm [thread:$0]  %s470, 128, %s467, %s455
        $region48: #{tpu_custom_call.1} parent=39 // pred_fallthru
          _
      $region40: #{tpu_custom_call.1} parent=5 // pred_fallthru
        _
      %p473 = scmp.le.s32.totalorder 2, %s14
      // Predicated region
      $region49: #{tpu_custom_call.1} parent=5 // pred_check
        %p474 = pneg %p473
      $region50: #{tpu_custom_call.1} parent=5 // pred_check_branch
        %476 = sbr.rel (%p474) target = $region52
      $region51: #{tpu_custom_call.1} parent=5 // pred_region
        %s477 = ssub.s32 %s14, 2
        // Predicated region
        $region53: #{tpu_custom_call.1} parent=51 // pred_check
          %p478 = pneg %p177
        $region54: #{tpu_custom_call.1} parent=51 // pred_check_branch
          %480 = sbr.rel (%p478) target = $region56
        $region55: #{tpu_custom_call.1} parent=51 // pred_region
          %s481 = sand.u32 %s162, 1
          %s482 = scalar_lea.sflag [#allocation4], %s481
          %s483 = sand.u32 %s162, 1
          %s484 = smul.addr %s483, 8
          %s485 = scalar_lea.vmem [#allocation3], %s484
          %486 = dma.done %s482, 128
        $region56: #{tpu_custom_call.1} parent=51 // pred_fallthru
          _
      $region52: #{tpu_custom_call.1} parent=5 // pred_fallthru
        _
    $region6: #{tpu_custom_call.1} parent=1 // loop_footer
      %s18 = sadd.s32 1, %s14
    $region7: #{tpu_custom_call.1} parent=1 // loop_footer_branch
      %13 = sbr.rel target = $region3
    $region8: #{tpu_custom_call.1} parent=1 // loop_exit
      _
    %487 = vsyncpa [#allocation4], 1
    %s488 = scalar_lea.sflag [#allocation4], 1
    %489 = vsyncpa %s488, 1

</llo_original>
